<compile_context>
chip_gen: v6e
topology: v6e:2x2x1
jax: 0.10.0
libtpu: 0.0.40
codegen_flags: <defaults>
</compile_context>

<pallas_src>
import functools
import math

import jax
import jax.numpy as jnp
import numpy as np
from jax.experimental import pallas as pl
from jax.experimental.pallas import tpu as pltpu

_TARGET_BLOCK_BYTES = 2 * 1024 * 1024  # ~2 MiB per block: mem-bound sweet spot, VMEM-safe


def build_pe_table(dim: int, max_len: int = 5000) -> jnp.ndarray:
    """Deterministic sinusoidal table, identical to the PyTorch buffer (max_len, dim)."""
    position = np.arange(0, max_len, dtype=np.float32)[:, None]
    div_term = np.exp(np.arange(0, dim, 2, dtype=np.float32) * -(math.log(10000.0) / dim))
    pe = np.zeros((max_len, dim), dtype=np.float32)
    pe[:, 0::2] = np.sin(position * div_term)
    pe[:, 1::2] = np.cos(position * div_term)
    return jnp.asarray(pe)


# ----------------------------------------------------------------------------- kernels


def _pos_enc_kernel_3d(emb_ref, pe_ref, out_ref, *, scale: float):
    # emb_ref/out_ref: (tS, tB, D) block; pe_ref: (tS, D) block (same dtype as emb).
    emb = emb_ref[...]
    pe = pe_ref[...]
    out_ref[...] = emb * jnp.asarray(scale, dtype=emb.dtype) + pe[:, None, :]


def _pos_enc_kernel_2d(emb_ref, pe_ref, out_ref, *, scale: float):
    # emb_ref/pe_ref/out_ref: (tS, tW) blocks of the flattened (seq, batch*dim) view.
    emb = emb_ref[...]
    out_ref[...] = emb * jnp.asarray(scale, dtype=emb.dtype) + pe_ref[...]


# ------------------------------------------------------------------------ tile choosers


def _choose_tiles_3d(seq_len, batch, dim, itemsize, target_bytes=_TARGET_BLOCK_BYTES):
    """(tS, tB): batch maps to sublanes (multiple of 8 or full), dim stays full (lanes)."""
    tb = batch if batch <= 8 else 8
    if seq_len <= 8:
        ts = seq_len
    else:
        ts = min(seq_len, max(8, (target_bytes // max(tb * dim * itemsize, 1)) // 8 * 8))
    # pe block uses ts as its sublane dim: ts is a multiple of 8 or == seq_len by construction.
    if ts == seq_len and batch > 8:
        # Whole sequence fits in one tile; spend leftover budget on a bigger batch tile.
        max_tb = (target_bytes // max(seq_len * dim * itemsize, 1)) // 8 * 8
        tb = int(min((batch // 8) * 8, max(8, max_tb)))
    return int(ts), int(tb)


def _choose_tiles_2d(seq_len, width, itemsize, target_bytes=_TARGET_BLOCK_BYTES):
    """(tS, tW) for the flattened (seq, batch*dim) view; tS sublanes, tW lanes."""
    ts = seq_len if seq_len <= 8 else 8
    if ts * width * itemsize <= target_bytes:
        tw = width
        if seq_len > 8:
            max_ts = (target_bytes // max(width * itemsize, 1)) // 8 * 8
            ts = int(min((seq_len // 8) * 8, max(8, max_ts)))
    else:
        if width <= 128:
            tw = width
        else:
            tw = int(min((width // 128) * 128,
                         max(128, (target_bytes // max(ts * itemsize, 1)) // 128 * 128)))
    return int(ts), int(tw)


# ----------------------------------------------------------------------------- wrapper


def positional_encoding(emb: jnp.ndarray,
                        pe_table: jnp.ndarray,
                        step: int | None = None,
                        dropout_p: float = 0.0) -> jnp.ndarray:
    """Forward pass of PositionalEncoding.

    emb: (seq_len, batch, dim); pe_table: (max_len, dim).
    step: if given, use pe_table[step] for every position (decode; seq_len typically 1).
    """
    seq_len, batch, dim = emb.shape
    scale = math.sqrt(dim)

    # TODO(synk): nn.Dropout is identity in eval mode; training-mode stochastic dropout
    # would use pltpu.prng_seed / pltpu.stateful_bernoulli inside the kernel.
    del dropout_p

    # Decode / single-step path: launch + per-grid-step overhead dominates a 1-row kernel,
    # so a fused XLA elementwise is faster (perf-review item).
    if step is not None or seq_len == 1:
        pe_sl = pe_table[step][None, :] if step is not None else pe_table[:seq_len]
        return emb * jnp.asarray(scale, dtype=emb.dtype) + pe_sl[:, None, :].astype(emb.dtype)

    itemsize = jnp.dtype(emb.dtype).itemsize
    pe_slice = pe_table[:seq_len].astype(emb.dtype)  # cast once in the wrapper

    flops = 2 * seq_len * batch * dim

    if dim % 128 == 0:
        # Production layout: dim on lanes (dense), batch on sublanes, pe broadcast in-kernel.
        ts, tb = _choose_tiles_3d(seq_len, batch, dim, itemsize)
        grid = (pl.cdiv(seq_len, ts), pl.cdiv(batch, tb))  # batch is the inner axis
        return pl.pallas_call(
            functools.partial(_pos_enc_kernel_3d, scale=scale),
            out_shape=jax.ShapeDtypeStruct((seq_len, batch, dim), emb.dtype),
            grid=grid,
            in_specs=[
                pl.BlockSpec((ts, tb, dim), lambda si, bi: (si, bi, 0)),
                # pe ignores the batch grid axis -> stays resident across batch tiles.
                pl.BlockSpec((ts, dim), lambda si, bi: (si, 0)),
            ],
            out_specs=pl.BlockSpec((ts, tb, dim), lambda si, bi: (si, bi, 0)),
            compiler_params=pltpu.CompilerParams(
                dimension_semantics=("parallel", "parallel"),
                vmem_limit_bytes=32 * 1024 * 1024,
            ),
            cost_estimate=pl.CostEstimate(
                flops=flops,
                transcendentals=0,
                bytes_accessed=2 * seq_len * batch * dim * itemsize + seq_len * dim * itemsize,
            ),
        )(emb, pe_slice)

    # Small / odd dim fallback: flatten (batch, dim) so the output last dim is as lane-dense
    # as possible; pe is pre-tiled across batch in the wrapper (pure 2D elementwise add).
    width = batch * dim
    emb2 = emb.reshape(seq_len, width)
    pe2 = jnp.tile(pe_slice, (1, batch))
    ts, tw = _choose_tiles_2d(seq_len, width, itemsize)
    grid = (pl.cdiv(seq_len, ts), pl.cdiv(width, tw))
    out2 = pl.pallas_call(
        functools.partial(_pos_enc_kernel_2d, scale=scale),
        out_shape=jax.ShapeDtypeStruct((seq_len, width), emb.dtype),
        grid=grid,
        in_specs=[
            pl.BlockSpec((ts, tw), lambda si, wi: (si, wi)),
            pl.BlockSpec((ts, tw), lambda si, wi: (si, wi)),
        ],
        out_specs=pl.BlockSpec((ts, tw), lambda si, wi: (si, wi)),
        compiler_params=pltpu.CompilerParams(
            dimension_semantics=("parallel", "parallel"),
            vmem_limit_bytes=32 * 1024 * 1024,
        ),
        cost_estimate=pl.CostEstimate(
            flops=flops,
            transcendentals=0,
            bytes_accessed=3 * seq_len * width * itemsize,
        ),
    )(emb2, pe2)
    return out2.reshape(seq_len, batch, dim)


if __name__ == "__main__":
    key = jax.random.PRNGKey(0)
    k1, k2 = jax.random.split(key)

    # Path 1: dim % 128 != 0 -> flattened lane-packed 2D kernel.
    S1, B1, D1 = 8, 2, 32
    emb1 = jax.random.normal(k1, (S1, B1, D1), dtype=jnp.float32)
    pe1 = build_pe_table(D1, max_len=5000)
    out1 = jax.block_until_ready(positional_encoding(emb1, pe1, step=None))
    ref1 = emb1 * math.sqrt(D1) + pe1[:S1][:, None, :]
    assert jnp.allclose(out1, ref1, atol=1e-5), "mismatch on 2D (small-dim) path"

    # Path 2: dim % 128 == 0 -> tiled 3D kernel (production lane-dense layout).
    S2, B2, D2 = 16, 4, 128
    emb2 = jax.random.normal(k2, (S2, B2, D2), dtype=jnp.float32)
    pe2 = build_pe_table(D2, max_len=5000)
    out2 = jax.block_until_ready(positional_encoding(emb2, pe2, step=None))
    ref2 = emb2 * math.sqrt(D2) + pe2[:S2][:, None, :]
    assert jnp.allclose(out2, ref2, atol=1e-5), "mismatch on 3D (lane-dense) path"

    # Path 3: decode step (seq_len == 1) -> plain fused XLA add (per perf review).
    emb3 = emb1[:1]
    out3 = jax.block_until_ready(positional_encoding(emb3, pe1, step=5))
    ref3 = emb3 * math.sqrt(D1) + pe1[5][None, None, :]
    assert jnp.allclose(out3, ref3, atol=1e-5), "mismatch on step/decode path"

    print("KERNEL_OK")
</pallas_src>

<mosaic_0001>
module attributes {stable_mosaic.version = 11 : i64} {
  func.func @_pos_enc_kernel_2d(%arg0: i32, %arg1: i32, %arg2: memref<8x64xf32, #tpu.memory_space<vmem>>, %arg3: memref<8x64xf32, #tpu.memory_space<vmem>>, %arg4: memref<8x64xf32, #tpu.memory_space<vmem>>) attributes {dimension_semantics = [#tpu.dimension_semantics<parallel>, #tpu.dimension_semantics<parallel>], iteration_bounds = array<i64: 1, 1>, scalar_prefetch = 0 : i64, scratch_operands = 0 : i64, tpu.core_type = #tpu.core_type<tc>, window_params = [{transform_indices = @transform_0, window_bounds = array<i64: 8, 64>}, {transform_indices = @transform_1, window_bounds = array<i64: 8, 64>}, {transform_indices = @transform_2, window_bounds = array<i64: 8, 64>}]} {
    %c0 = arith.constant 0 : index
    %c0_0 = arith.constant 0 : index
    %0 = vector.load %arg2[%c0, %c0_0] : memref<8x64xf32, #tpu.memory_space<vmem>>, vector<8x64xf32>
    %cst = arith.constant 5.65685415 : f32
    %1 = vector.broadcast %cst : f32 to vector<8x64xf32>
    %2 = arith.mulf %0, %1 : vector<8x64xf32>
    %c0_1 = arith.constant 0 : index
    %c0_2 = arith.constant 0 : index
    %3 = vector.load %arg3[%c0_1, %c0_2] : memref<8x64xf32, #tpu.memory_space<vmem>>, vector<8x64xf32>
    %4 = arith.addf %2, %3 : vector<8x64xf32>
    %c0_3 = arith.constant 0 : index
    %c0_4 = arith.constant 0 : index
    %5 = vector.load %arg4[%c0_3, %c0_4] : memref<8x64xf32, #tpu.memory_space<vmem>>, vector<8x64xf32>
    tpu.vector_store %arg4[%c0_3, %c0_4], %4 {strides = array<i32>} : memref<8x64xf32, #tpu.memory_space<vmem>>, vector<8x64xf32>,
    return
  }
  func.func @transform_0(%arg0: i32, %arg1: i32) -> (i32, i32) {
    %c0_i32 = arith.constant 0 : i32
    return %arg0, %arg1 : i32, i32
  }
  func.func @transform_1(%arg0: i32, %arg1: i32) -> (i32, i32) {
    %c0_i32 = arith.constant 0 : i32
    return %arg0, %arg1 : i32, i32
  }
  func.func @transform_2(%arg0: i32, %arg1: i32) -> (i32, i32) {
    %c0_i32 = arith.constant 0 : i32
    return %arg0, %arg1 : i32, i32
  }
}

</mosaic_0001>

<llo_original>
// kernel: tpu_custom_call.1
$region0: #{tpu_custom_call.1}
  #allocation0 [shape = 'u32[]', space=smem, size = 0x4, offset = 0x4, fixed_abs, tag = 'smem constant byte address 0x4 - core index']
  #allocation1 [shape = 'u32[144,128]{1,0:T(1,128)}', space=vmem, size = 0x12000, scoped, tag = 'internal scratch']
  %s0 = inlined_call_operand.hbm [shape: f32[8,64], index: 0, kind: input, shape index: {}]
  %s1 = inlined_call_operand.hbm [shape: f32[8,64], index: 1, kind: input, shape index: {}]
  %s2 = inlined_call_operand.hbm [shape: f32[8,64], index: 2, kind: output, shape index: {}]
  %s3 = sld [smem:[#allocation0]]
  $region26: #{tpu_custom_call.1} parent=0
    _
  %s5 = ssub.s32 1, %s3
  %s6 = scalar_select 0, %s5, %s3
  $region1: #{tpu_custom_call.1} parent=0
    #allocation2 [shape = 'u8[4096]{0}', space=vmem, size = 0x1000, scoped, tag = 'input window, operand 0, single buffered']
    #allocation3 [shape = 's32[1]{0}', space=sflag, size = 0x4, scoped, tag = 'scoped memory for tpu_custom_call.1']
    #allocation4 [shape = 's32[1]{0}', space=sflag, size = 0x4, scoped, tag = 'scoped memory for tpu_custom_call.1']
    #allocation5 [shape = 'u8[4096]{0}', space=vmem, size = 0x1000, scoped, tag = 'input window, operand 1, single buffered']
    #allocation6 [shape = 's32[1]{0}', space=sflag, size = 0x4, scoped, tag = 'scoped memory for tpu_custom_call.1']
    #allocation7 [shape = 'u8[4096]{0}', space=vmem, size = 0x1000, scoped, tag = 'output window, operand 0, single buffered']
    %7 = vsyncpa [#allocation3], 0
    %8 = vsyncpa [#allocation6], 0
    %9 = vsyncpa [#allocation4], 0
    // Predicated region
    $region2: #{tpu_custom_call.1} parent=1 // pred_check
      _
    $region3: #{tpu_custom_call.1} parent=1 // pred_check_branch
      %11 = sbr.rel (0) target = $region5
    $region4: #{tpu_custom_call.1} parent=1 // pred_region
      %s13 = ssub.s32 128, 128
      %14 = vsyncadd [#allocation3], %s13
      %s16 = sshll.u32 [#allocation2], 4
      %s17 = int_to_ptr.vmem [resolvable:$true] %s16
      %19 = dma.hbm_to_vmem [thread:$0]  %s0, 128, %s17, [#allocation3]
    $region5: #{tpu_custom_call.1} parent=1 // pred_fallthru
      _
    // Predicated region
    $region6: #{tpu_custom_call.1} parent=1 // pred_check
      _
    $region7: #{tpu_custom_call.1} parent=1 // pred_check_branch
      %21 = sbr.rel (0) target = $region9
    $region8: #{tpu_custom_call.1} parent=1 // pred_region
      %s23 = ssub.s32 128, 128
      %24 = vsyncadd [#allocation6], %s23
      %s26 = sshll.u32 [#allocation5], 4
      %s27 = int_to_ptr.vmem [resolvable:$true] %s26
      %29 = dma.hbm_to_vmem [thread:$0]  %s1, 128, %s27, [#allocation6]
    $region9: #{tpu_custom_call.1} parent=1 // pred_fallthru
      _
    // Predicated region
    $region10: #{tpu_custom_call.1} parent=1 // pred_check
      _
    $region11: #{tpu_custom_call.1} parent=1 // pred_check_branch
      %31 = sbr.rel (0) target = $region13
    $region12: #{tpu_custom_call.1} parent=1 // pred_region
      %32 = dma.done [#allocation3], 128
    $region13: #{tpu_custom_call.1} parent=1 // pred_fallthru
      _
    // Predicated region
    $region14: #{tpu_custom_call.1} parent=1 // pred_check
      _
    $region15: #{tpu_custom_call.1} parent=1 // pred_check_branch
      %34 = sbr.rel (0) target = $region17
    $region16: #{tpu_custom_call.1} parent=1 // pred_region
      %35 = dma.done [#allocation6], 128
    $region17: #{tpu_custom_call.1} parent=1 // pred_fallthru
      _
    %v36 = vld [vmem:[#allocation2] sm:$0xff]
    %v37 = vmul.f32 %v36, 5.656854
    %v38 = vld [vmem:[#allocation5] sm:$0xff]
    %v39 = vadd.f32 %v37, %v38
    %vm40 = vcmask 523264
    %41 = vst.msk [vmem:[#allocation7] sm:$0xff] %vm40, %v39
    // Predicated region
    $region18: #{tpu_custom_call.1} parent=1 // pred_check
      _
    $region19: #{tpu_custom_call.1} parent=1 // pred_check_branch
      %43 = sbr.rel (0) target = $region21
    $region20: #{tpu_custom_call.1} parent=1 // pred_region
      %s45 = ssub.s32 128, 128
      %46 = vsyncadd [#allocation4], %s45
      %s48 = sshll.u32 [#allocation7], 4
      %s49 = int_to_ptr.vmem [resolvable:$true] %s48
      %51 = dma.vmem_to_hbm [thread:$0]  %s49, 128, %s2, [#allocation4]
    $region21: #{tpu_custom_call.1} parent=1 // pred_fallthru
      _
    // Predicated region
    $region22: #{tpu_custom_call.1} parent=1 // pred_check
      _
    $region23: #{tpu_custom_call.1} parent=1 // pred_check_branch
      %53 = sbr.rel (0) target = $region25
    $region24: #{tpu_custom_call.1} parent=1 // pred_region
      %54 = dma.done [#allocation4], 128
    $region25: #{tpu_custom_call.1} parent=1 // pred_fallthru
      _
    %55 = vsyncpa [#allocation3], 1
    %56 = vsyncpa [#allocation6], 1
    %57 = vsyncpa [#allocation4], 1

</llo_original>
